<compile_context>
chip_gen: v7x
topology: tpu7x:2x2x1
jax: 0.10.0
libtpu: 0.0.40
codegen_flags: <defaults>
</compile_context>

<pallas_src>
import functools

import jax
import jax.numpy as jnp
from jax.experimental import pallas as pl
from jax.experimental.pallas import tpu as pltpu


def _gaussian_noise_kernel(seed_ref, x_ref, o_ref, *, sigma):
    tile_r, lane = x_ref.shape
    half_r = tile_r // 2           # tile_r is always an even multiple of 8
    n_pairs = half_r * lane        # each (u1, u2) pair yields 2 normals

    # ---- per-element counters (stateless across grid steps) -----------------
    tile_idx = pl.program_id(0).astype(jnp.uint32)
    base = jnp.uint32(n_pairs) * tile_idx

    row = jax.lax.broadcasted_iota(jnp.int32, (half_r, lane), 0).astype(jnp.uint32)
    col = jax.lax.broadcasted_iota(jnp.int32, (half_r, lane), 1).astype(jnp.uint32)
    ctr = base + row * jnp.uint32(lane) + col
    c2 = ctr + ctr                              # 2 counters per pair

    seed_u = seed_ref[0].astype(jnp.uint32) * jnp.uint32(0x9E3779B9)

    # ---- lowbias32 integer mixer (good avalanche, pure VPU ops) --------------
    def mix(v):
        v = v ^ (v >> jnp.uint32(16))
        v = v * jnp.uint32(0x7FEB352D)
        v = v ^ (v >> jnp.uint32(15))
        v = v * jnp.uint32(0x846CA68B)
        v = v ^ (v >> jnp.uint32(16))
        return v

    bits1 = mix(c2 + seed_u)
    bits2 = mix(c2 + jnp.uint32(1) + seed_u)

    # ---- uint32 -> uniform via exponent-bit trick ----------------------------
    one_exp = jnp.uint32(0x3F800000)
    f1 = jax.lax.bitcast_convert_type((bits1 >> jnp.uint32(9)) | one_exp, jnp.float32)
    f2 = jax.lax.bitcast_convert_type((bits2 >> jnp.uint32(9)) | one_exp, jnp.float32)
    u1 = 2.0 - f1            # in (0, 1]  -> safe for log
    u2 = f2 - 1.0            # in [0, 1)

    # ---- Box-Muller, using BOTH outputs --------------------------------------
    r = jnp.sqrt(-2.0 * jnp.log(u1))
    theta = (2.0 * jnp.pi) * u2
    z = jnp.concatenate([r * jnp.cos(theta), r * jnp.sin(theta)], axis=0)  # (tile_r, lane)

    # ---- fused relative-noise add (noise math stays in f32) ------------------
    xf = x_ref[...].astype(jnp.float32)
    o_ref[...] = (xf + (sigma * xf) * z).astype(o_ref.dtype)


def gaussian_noise(x, seed, *, sigma=0.1, is_relative_detach=True, training=True):
    """Pallas GaussianNoise forward. x: any-shape array (e.g. NCHW)."""
    # is_relative_detach only changes autodiff behaviour, not the forward value.
    if (not training) or sigma == 0:
        return x

    orig_shape = x.shape
    orig_dtype = x.dtype
    total = int(x.size)

    # dtype-aware minimum sublane multiple (f32: 8, bf16: 16, int8/fp8: 32)
    itemsize = jnp.dtype(orig_dtype).itemsize
    sub = {4: 8, 2: 16, 1: 32}.get(itemsize, 8)

    # Lane-dense last dim: biggest multiple of 128 that still leaves >= one
    # full (sub x L) block of real data.
    lane = 128
    for cand in (4096, 2048, 1024, 512, 256):
        if total >= cand * sub:
            lane = cand
            break

    rows = pl.cdiv(total, lane)
    rows_padded = pl.cdiv(rows, sub) * sub
    padded_total = rows_padded * lane

    flat = x.reshape(total)
    if padded_total != total:
        flat = jnp.pad(flat, (0, padded_total - total))
    x2 = flat.reshape(rows_padded, lane)

    # Large VMEM-budgeted tile: ~256K elements (~1 MiB f32) per block, rows a
    # multiple of `sub`; with double-buffered in/out + f32 temporaries this
    # stays well under the scoped VMEM limit on v5e/v6e/v7x.
    cap_elems = 256 * 1024
    tile_r = max(sub, min(rows_padded, (cap_elems // lane) // sub * sub))
    grid = (pl.cdiv(rows_padded, tile_r),)

    seed_arr = jnp.asarray([seed], dtype=jnp.int32)

    out2 = pl.pallas_call(
        functools.partial(_gaussian_noise_kernel, sigma=float(sigma)),
        out_shape=jax.ShapeDtypeStruct((rows_padded, lane), orig_dtype),
        grid_spec=pltpu.PrefetchScalarGridSpec(
            num_scalar_prefetch=1,
            grid=grid,
            in_specs=[pl.BlockSpec((tile_r, lane), lambda i, seed: (i, 0))],
            out_specs=pl.BlockSpec((tile_r, lane), lambda i, seed: (i, 0)),
        ),
        compiler_params=pltpu.CompilerParams(
            # counter-based PRNG -> tiles are independent; lets v7x use both TCs
            dimension_semantics=("parallel",),
            vmem_limit_bytes=32 * 1024 * 1024,
        ),
    )(seed_arr, x2)

    out_flat = out2.reshape(padded_total)
    if padded_total != total:
        out_flat = out_flat[:total]
    return out_flat.reshape(orig_shape)


if __name__ == "__main__":
    key = jax.random.PRNGKey(0)
    x = jax.random.normal(key, (2, 4, 16, 16), dtype=jnp.float32)

    y = gaussian_noise(x, seed=0, sigma=0.1, is_relative_detach=True, training=True)
    y = jax.block_until_ready(y)

    assert y.shape == x.shape and y.dtype == x.dtype
    assert bool(jnp.all(jnp.isfinite(y)))

    # Noise is relative: z = (y - x) / (sigma * x) should be roughly N(0, 1).
    z = jnp.where(x != 0, (y - x) / (0.1 * x), 0.0)
    assert abs(float(jnp.mean(z))) < 0.25
    assert 0.5 < float(jnp.std(z)) < 2.0

    # eval mode / sigma == 0 are the identity
    y_eval = gaussian_noise(x, seed=0, sigma=0.1, training=False)
    assert bool(jnp.all(y_eval == x))
    y_zero = gaussian_noise(x, seed=0, sigma=0.0, training=True)
    assert bool(jnp.all(y_zero == x))

    print("KERNEL_OK")
</pallas_src>

<mosaic_0001>
module attributes {stable_mosaic.version = 11 : i64} {
  func.func @_gaussian_noise_kernel(%arg0: i32, %arg1: memref<1xi32, #tpu.memory_space<smem>>, %arg2: memref<8x256xf32, #tpu.memory_space<vmem>>, %arg3: memref<8x256xf32, #tpu.memory_space<vmem>>) attributes {dimension_semantics = [#tpu.dimension_semantics<parallel>], iteration_bounds = array<i64: 1>, scalar_prefetch = 1 : i64, scratch_operands = 0 : i64, tpu.core_type = #tpu.core_type<tc>, window_params = [{transform_indices = @transform_0, window_bounds = array<i64: 8, 256>}, {transform_indices = @transform_1, window_bounds = array<i64: 8, 256>}]} {
    %c1024_i32 = arith.constant 1024 : i32
    %0 = arith.muli %c1024_i32, %arg0 : i32
    %1 = tpu.iota {dimensions = array<i32: 0>} : vector<4x256xi32>
    %2 = tpu.iota {dimensions = array<i32: 1>} : vector<4x256xi32>
    %c256_i32 = arith.constant 256 : i32
    %3 = vector.broadcast %c256_i32 : i32 to vector<4x256xi32>
    %4 = arith.muli %1, %3 : vector<4x256xi32>
    %5 = vector.broadcast %0 : i32 to vector<4x256xi32>
    %6 = arith.addi %5, %4 : vector<4x256xi32>
    %7 = arith.addi %6, %2 : vector<4x256xi32>
    %8 = arith.addi %7, %7 : vector<4x256xi32>
    %c0 = arith.constant 0 : index
    %9 = memref.load %arg1[%c0] : memref<1xi32, #tpu.memory_space<smem>>
    %c-1640531527_i32 = arith.constant -1640531527 : i32
    %10 = arith.muli %9, %c-1640531527_i32 : i32
    %11 = vector.broadcast %10 : i32 to vector<4x256xi32>
    %12 = arith.addi %8, %11 : vector<4x256xi32>
    %c16_i32 = arith.constant 16 : i32
    %13 = vector.broadcast %c16_i32 : i32 to vector<4x256xi32>
    %14 = arith.shrui %12, %13 : vector<4x256xi32>
    %15 = arith.xori %12, %14 : vector<4x256xi32>
    %c2146121005_i32 = arith.constant 2146121005 : i32
    %16 = vector.broadcast %c2146121005_i32 : i32 to vector<4x256xi32>
    %17 = arith.muli %15, %16 : vector<4x256xi32>
    %c15_i32 = arith.constant 15 : i32
    %18 = vector.broadcast %c15_i32 : i32 to vector<4x256xi32>
    %19 = arith.shrui %17, %18 : vector<4x256xi32>
    %20 = arith.xori %17, %19 : vector<4x256xi32>
    %c-2073254261_i32 = arith.constant -2073254261 : i32
    %21 = vector.broadcast %c-2073254261_i32 : i32 to vector<4x256xi32>
    %22 = arith.muli %20, %21 : vector<4x256xi32>
    %c16_i32_0 = arith.constant 16 : i32
    %23 = vector.broadcast %c16_i32_0 : i32 to vector<4x256xi32>
    %24 = arith.shrui %22, %23 : vector<4x256xi32>
    %25 = arith.xori %22, %24 : vector<4x256xi32>
    %c1_i32 = arith.constant 1 : i32
    %26 = vector.broadcast %c1_i32 : i32 to vector<4x256xi32>
    %27 = arith.addi %8, %26 : vector<4x256xi32>
    %28 = vector.broadcast %10 : i32 to vector<4x256xi32>
    %29 = arith.addi %27, %28 : vector<4x256xi32>
    %c16_i32_1 = arith.constant 16 : i32
    %30 = vector.broadcast %c16_i32_1 : i32 to vector<4x256xi32>
    %31 = arith.shrui %29, %30 : vector<4x256xi32>
    %32 = arith.xori %29, %31 : vector<4x256xi32>
    %c2146121005_i32_2 = arith.constant 2146121005 : i32
    %33 = vector.broadcast %c2146121005_i32_2 : i32 to vector<4x256xi32>
    %34 = arith.muli %32, %33 : vector<4x256xi32>
    %c15_i32_3 = arith.constant 15 : i32
    %35 = vector.broadcast %c15_i32_3 : i32 to vector<4x256xi32>
    %36 = arith.shrui %34, %35 : vector<4x256xi32>
    %37 = arith.xori %34, %36 : vector<4x256xi32>
    %c-2073254261_i32_4 = arith.constant -2073254261 : i32
    %38 = vector.broadcast %c-2073254261_i32_4 : i32 to vector<4x256xi32>
    %39 = arith.muli %37, %38 : vector<4x256xi32>
    %c16_i32_5 = arith.constant 16 : i32
    %40 = vector.broadcast %c16_i32_5 : i32 to vector<4x256xi32>
    %41 = arith.shrui %39, %40 : vector<4x256xi32>
    %42 = arith.xori %39, %41 : vector<4x256xi32>
    %c9_i32 = arith.constant 9 : i32
    %43 = vector.broadcast %c9_i32 : i32 to vector<4x256xi32>
    %44 = arith.shrui %25, %43 : vector<4x256xi32>
    %c1065353216_i32 = arith.constant 1065353216 : i32
    %45 = vector.broadcast %c1065353216_i32 : i32 to vector<4x256xi32>
    %46 = arith.ori %44, %45 : vector<4x256xi32>
    %47 = tpu.bitcast %46 : vector<4x256xi32> -> vector<4x256xf32>
    %c9_i32_6 = arith.constant 9 : i32
    %48 = vector.broadcast %c9_i32_6 : i32 to vector<4x256xi32>
    %49 = arith.shrui %42, %48 : vector<4x256xi32>
    %c1065353216_i32_7 = arith.constant 1065353216 : i32
    %50 = vector.broadcast %c1065353216_i32_7 : i32 to vector<4x256xi32>
    %51 = arith.ori %49, %50 : vector<4x256xi32>
    %52 = tpu.bitcast %51 : vector<4x256xi32> -> vector<4x256xf32>
    %cst = arith.constant 2.000000e+00 : f32
    %53 = vector.broadcast %cst : f32 to vector<4x256xf32>
    %54 = arith.subf %53, %47 : vector<4x256xf32>
    %cst_8 = arith.constant 1.000000e+00 : f32
    %55 = vector.broadcast %cst_8 : f32 to vector<4x256xf32>
    %56 = arith.subf %52, %55 : vector<4x256xf32>
    %57 = math.log %54 : vector<4x256xf32>
    %cst_9 = arith.constant -2.000000e+00 : f32
    %58 = vector.broadcast %cst_9 : f32 to vector<4x256xf32>
    %59 = arith.mulf %58, %57 : vector<4x256xf32>
    %60 = math.sqrt %59 : vector<4x256xf32>
    %cst_10 = arith.constant 6.28318548 : f32
    %61 = vector.broadcast %cst_10 : f32 to vector<4x256xf32>
    %62 = arith.mulf %61, %56 : vector<4x256xf32>
    %63 = math.cos %62 : vector<4x256xf32>
    %64 = arith.mulf %60, %63 : vector<4x256xf32>
    %65 = math.sin %62 : vector<4x256xf32>
    %66 = arith.mulf %60, %65 : vector<4x256xf32>
    %67 = tpu.concatenate %64, %66 in 0 : vector<4x256xf32>, vector<4x256xf32> -> vector<8x256xf32>
    %c0_11 = arith.constant 0 : index
    %c0_12 = arith.constant 0 : index
    %68 = vector.load %arg2[%c0_11, %c0_12] : memref<8x256xf32, #tpu.memory_space<vmem>>, vector<8x256xf32>
    %cst_13 = arith.constant 1.000000e-01 : f32
    %69 = vector.broadcast %cst_13 : f32 to vector<8x256xf32>
    %70 = arith.mulf %69, %68 : vector<8x256xf32>
    %71 = arith.mulf %70, %67 : vector<8x256xf32>
    %72 = arith.addf %68, %71 : vector<8x256xf32>
    %c0_14 = arith.constant 0 : index
    %c0_15 = arith.constant 0 : index
    %73 = vector.load %arg3[%c0_14, %c0_15] : memref<8x256xf32, #tpu.memory_space<vmem>>, vector<8x256xf32>
    tpu.vector_store %arg3[%c0_14, %c0_15], %72 {strides = array<i32>} : memref<8x256xf32, #tpu.memory_space<vmem>>, vector<8x256xf32>,
    return
  }
  func.func @transform_0(%arg0: i32, %arg1: memref<1xi32, #tpu.memory_space<smem>>) -> (i32, i32) {
    %c0_i32 = arith.constant 0 : i32
    %c0_i32_0 = arith.constant 0 : i32
    return %arg0, %c0_i32 : i32, i32
  }
  func.func @transform_1(%arg0: i32, %arg1: memref<1xi32, #tpu.memory_space<smem>>) -> (i32, i32) {
    %c0_i32 = arith.constant 0 : i32
    %c0_i32_0 = arith.constant 0 : i32
    return %arg0, %c0_i32 : i32, i32
  }
}

</mosaic_0001>

<llo_original>
// kernel: tpu_custom_call.1
$region0: #{tpu_custom_call.1}
  #allocation0 [shape = 'u32[]', space=smem, size = 0x4, offset = 0x4, fixed_abs, tag = 'smem constant byte address 0x4 - core index']
  #allocation1 [shape = 'u32[144,128]{1,0:T(1,128)}', space=vmem, size = 0x12000, scoped, tag = 'internal scratch']
  #allocation2 [shape = 's32[1]{0}', space=sflag, size = 0x4, scoped, tag = 'scoped memory for tpu_custom_call.1']
  #allocation3 [shape = 's32[1]{0:T(128)S(6)}', space=smem, size = 0x200, scoped, tag = 'prefetched SMEM operand 0']
  %s0 = inlined_call_operand.<no memory space> [shape: s32[1], index: 0, kind: input, shape index: {}]
  %s1 = inlined_call_operand.hbm [shape: f32[8,256], index: 1, kind: input, shape index: {}]
  %s2 = inlined_call_operand.hbm [shape: f32[8,256], index: 2, kind: output, shape index: {}]
  %s3 = sld [smem:[#allocation0]]
  $region18: #{tpu_custom_call.1} parent=0
    _
  %s5 = ssub.s32 1, %s3
  %s6 = scalar_select 0, %s5, %s3
  %7 = sst [smem:[#allocation3]] %s0
  $region1: #{tpu_custom_call.1} parent=0
    #allocation4 [shape = 'u8[8192]{0}', space=vmem, size = 0x2000, scoped, tag = 'input window, operand 1, single buffered']
    #allocation5 [shape = 's32[1]{0}', space=sflag, size = 0x4, scoped, tag = 'scoped memory for tpu_custom_call.1']
    #allocation6 [shape = 's32[1]{0}', space=sflag, size = 0x4, scoped, tag = 'scoped memory for tpu_custom_call.1']
    #allocation7 [shape = 'u8[8192]{0}', space=vmem, size = 0x2000, scoped, tag = 'output window, operand 0, single buffered']
    %8 = vsyncpa [#allocation5], 0
    %9 = vsyncpa [#allocation6], 0
    // Predicated region
    $region2: #{tpu_custom_call.1} parent=1 // pred_check
      _
    $region3: #{tpu_custom_call.1} parent=1 // pred_check_branch
      %11 = sbr.rel (0) target = $region5
    $region4: #{tpu_custom_call.1} parent=1 // pred_region
      %s13 = ssub.s32 256, 256
      %14 = vsyncadd [#allocation5], %s13
      %s16 = sshll.u32 [#allocation4], 4
      %s17 = int_to_ptr.vmem [resolvable:$true] %s16
      %19 = dma.hbm_to_vmem [thread:$0]  %s1, 256, %s17, [#allocation5]
    $region5: #{tpu_custom_call.1} parent=1 // pred_fallthru
      _
    // Predicated region
    $region6: #{tpu_custom_call.1} parent=1 // pred_check
      _
    $region7: #{tpu_custom_call.1} parent=1 // pred_check_branch
      %21 = sbr.rel (0) target = $region9
    $region8: #{tpu_custom_call.1} parent=1 // pred_region
      %22 = dma.done [#allocation5], 256
    $region9: #{tpu_custom_call.1} parent=1 // pred_fallthru
      _
    %s23 = smul.u32 0, 1024
    %v24 = vlaneseq
    %v25 = vshrl.u32 %v24, 7
    %v26 = vlaneseq
    %v27 = vand.u32 %v26, 127
    %v28 = vadd.s32 %v27, 128
    %v29 = vmul.u32 %v25, 256
    %v30 = vstv %s23
    %v31 = vadd.s32 %v30, %v29
    %v32 = vadd.s32 %v31, %v27
    %v33 = vadd.s32 %v31, %v28
    %v34 = vadd.s32 %v32, %v32
    %v35 = vadd.s32 %v33, %v33
    %s36 = sld [smem:[#allocation3]]
    %s37 = smul.u32 %s36, 2654435769
    %v38 = vstv %s37
    %v39 = vadd.s32 %v34, %v38
    %v40 = vadd.s32 %v35, %v38
    %v41 = vshrl.u32 %v39, 16
    %v42 = vshrl.u32 %v40, 16
    %v43 = vxor.u32 %v39, %v41
    %v44 = vxor.u32 %v40, %v42
    %v45 = vmul.u32 %v43, 2146121005
    %v46 = vmul.u32 %v44, 2146121005
    %v47 = vshrl.u32 %v45, 15
    %v48 = vshrl.u32 %v46, 15
    %v49 = vxor.u32 %v45, %v47
    %v50 = vxor.u32 %v46, %v48
    %v51 = vmul.u32 %v49, 2221713035
    %v52 = vmul.u32 %v50, 2221713035
    %v53 = vshrl.u32 %v51, 16
    %v54 = vshrl.u32 %v52, 16
    %v55 = vxor.u32 %v51, %v53
    %v56 = vxor.u32 %v52, %v54
    %v57 = vadd.s32 %v34, 1
    %v58 = vadd.s32 %v35, 1
    %v59 = vadd.s32 %v57, %v38
    %v60 = vadd.s32 %v58, %v38
    %v61 = vshrl.u32 %v59, 16
    %v62 = vshrl.u32 %v60, 16
    %v63 = vxor.u32 %v59, %v61
    %v64 = vxor.u32 %v60, %v62
    %v65 = vmul.u32 %v63, 2146121005
    %v66 = vmul.u32 %v64, 2146121005
    %v67 = vshrl.u32 %v65, 15
    %v68 = vshrl.u32 %v66, 15
    %v69 = vxor.u32 %v65, %v67
    %v70 = vxor.u32 %v66, %v68
    %v71 = vmul.u32 %v69, 2221713035
    %v72 = vmul.u32 %v70, 2221713035
    %v73 = vshrl.u32 %v71, 16
    %v74 = vshrl.u32 %v72, 16
    %v75 = vxor.u32 %v71, %v73
    %v76 = vxor.u32 %v72, %v74
    %v77 = vshrl.u32 %v55, 9
    %v78 = vshrl.u32 %v56, 9
    %v79 = vor.u32 %v77, 1065353216
    %v80 = vor.u32 %v78, 1065353216
    %v83 = vshrl.u32 %v75, 9
    %v84 = vshrl.u32 %v76, 9
    %v85 = vor.u32 %v83, 1065353216
    %v86 = vor.u32 %v84, 1065353216
    %v89 = vsub.f32 2.0, %v79
    %v90 = vsub.f32 2.0, %v80
    %v91 = vsub.f32 %v85, 1.0
    %v92 = vsub.f32 %v86, 1.0
    %v93 = vlog2.pop %v89
    %v94 = vmul.f32 %v93, 0.6931472
    %v95 = vlog2.pop %v90
    %v96 = vmul.f32 %v95, 0.6931472
    %v97 = vmul.f32 %v94, -2.0
    %v98 = vmul.f32 %v96, -2.0
    %v99 = vrsqrt.pop %v97
    %v100 = vmul.f32 %v97, %v99
    %vm101 = vcmp.eq.f32.partialorder %v97, inf
    %v102 = vsel %vm101, %v97, %v100
    %vm103 = vcmp.eq.f32.partialorder %v97, 0.0
    %v104 = vand.u32 %v97, 2147483648
    %v105 = vsel %vm103, %v104, %v102
    %v106 = vrsqrt.pop %v98
    %v107 = vmul.f32 %v98, %v106
    %vm108 = vcmp.eq.f32.partialorder %v98, inf
    %v109 = vsel %vm108, %v98, %v107
    %vm110 = vcmp.eq.f32.partialorder %v98, 0.0
    %v111 = vand.u32 %v98, 2147483648
    %v112 = vsel %vm110, %v111, %v109
    %v113 = vmul.f32 %v91, 6.2831855
    %v114 = vmul.f32 %v92, 6.2831855
    %v115 = vand.u32 2147483647, %v113
    %vm116 = vcmp.le.f32.partialorder %v115, 0.7853982
    %vm117 = vcmp.lt.s32.totalorder %v113, 0
    %v118 = vand.u32 %v113, 2139095040
    %v119 = vshrl.u32 %v118, 23
    %v120 = vsub.s32 %v119, 127
    %v121 = vand.u32 2147483647, %v113
    %v122 = vand.u32 %v121, 8388607
    %v123 = vor.u32 %v122, 8388608
    %v124 = vsub.s32 0, %v123
    %v125 = vadd.s32 %v120, 1
    %vm126 = vcmp.gt.s32.totalorder %v125, 0
    %v127 = vsel %vm126, %v125, 0
    %v128 = vshrl.u32 %v127, 5
    %v129 = vand.u32 %v127, 31
    %v130 = vsub.s32 32, %v129
    %v131 = vshrl.u32 683565275, %v130
    %v132 = vshll.u32 683565275, %v129
    %v133 = vshrl.u32 2475754826, %v130
    %v134 = vor.u32 %v132, %v133
    %v135 = vshll.u32 2475754826, %v129
    %v136 = vshrl.u32 2131351028, %v130
    %v137 = vor.u32 %v135, %v136
    %v138 = vshll.u32 2131351028, %v129
    %v139 = vshrl.u32 2102212464, %v130
    %v140 = vor.u32 %v138, %v139
    %v141 = vshll.u32 2102212464, %v129
    %v142 = vshrl.u32 920167782, %v130
    %v143 = vor.u32 %v141, %v142
    %v144 = vshll.u32 920167782, %v129
    %v145 = vshrl.u32 1326507024, %v130
    %v146 = vor.u32 %v144, %v145
    %vm147 = vcmp.lt.s32.totalorder %v128, 1
    %vm148 = vcmp.lt.s32.totalorder %v128, 2
    %vm149 = vcmp.lt.s32.totalorder %v128, 3
    %vm150 = vcmp.lt.s32.totalorder %v128, 4
    %v151 = vsel %vm147, %v131, %v134
    %v152 = vsel %vm150, %v140, 2102212464
    %v153 = vsel %vm149, %v137, %v152
    %v154 = vsel %vm148, %v151, %v153
    %v155 = vsel %vm147, %v134, %v137
    %v156 = vsel %vm150, %v143, 920167782
    %v157 = vsel %vm149, %v140, %v156
    %v158 = vsel %vm148, %v155, %v157
    %v159 = vsel %vm147, %v137, %v140
    %v160 = vsel %vm150, %v146, 1326507024
    %v161 = vsel %vm149, %v143, %v160
    %v162 = vsel %vm148, %v159, %v161
    %v163 = vshll.u32 %v123, 8
    %v164 = vmul.u32.u64.compose %v163, %v162
    %v165 = vextract.low.u32 %v164
    %v166 = vextract.high.u32 %v164
    %v167 = vmul.u32.u64.compose %v163, %v158
    %v168 = vextract.low.u32 %v167
    %v169 = vextract.high.u32 %v167
    %v170 = vmul.u32 %v163, %v154
    %v171 = vadd.s32 %v166, %v168
    %vm172 = vc.u32 %v166, %v168
    %v173 = vadd.s32 %v169, 1
    %v174 = vsel %vm172, %v173, %v169
    %v175 = vadd.s32 %v170, %v174
    %v176 = vadd.s32 %v175, 536870912
    %v177 = vshrl.u32 %v176, 30
    %v178 = vshll.u32 %v177, 30
    %v179 = vsub.s32 %v175, %v178
    %vm180 = vcmp.lt.s32.totalorder %v179, 0
    %v181 = vsub.s32 0, %v179
    %v182 = vsel %vm180, %v181, %v179
    %v183 = vclz %v182
    %v184 = vsub.s32 %v183, 2
    %vm185 = vcmp.gt.s32.totalorder 0, %v184
    %v186 = vsel %vm185, 0, %v184
    %v187 = vsub.s32 32, %v186
    %v188 = vshll.u32 %v179, %v186
    %v189 = vshrl.u32 %v171, %v187
    %v190 = vor.u32 %v188, %v189
    %v191 = vsub.s32 4294967266, %v186
    %v192 = vadd.s32 %v191, 127
    %v193 = vshll.u32 %v192, 23
    %v194 = vor.u32 4788187, %v193
    %v195 = vand.u32 2147483647, %v194
    %v197 = vcvt.s32.f32 %v190
    %v198 = vmul.f32 %v197, %v195
    %v199 = vxor.u32 %v198, 2147483648
    %v200 = vsel %vm117, %v199, %v198
    %v201 = vsub.s32 4, %v177
    %v202 = vsel %vm117, %v201, %v177
    %v203 = vsel %vm116, %v113, %v200
    %v204 = vsel %vm116, 0, %v202
    %v205 = vcosq.f32.pop %v203
    %v206 = vsinq.f32.pop %v203
    %vm207 = vweird.f32 %v113
    %v208 = vand.u32 %v204, 3
    %vm209 = vcmp.lt.s32.totalorder %v208, 2
    %vm210 = vcmp.eq.s32.totalorder %v208, 0
    %v211 = vxor.u32 %v206, 2147483648
    %v212 = vsel %vm210, %v205, %v211
    %vm213 = vcmp.eq.s32.totalorder %v208, 2
    %v214 = vxor.u32 %v205, 2147483648
    %v215 = vsel %vm213, %v214, %v206
    %v216 = vsel %vm209, %v212, %v215
    %v217 = vsel %vm207, nan, %v216
    %v218 = vand.u32 2147483647, %v114
    %vm219 = vcmp.le.f32.partialorder %v218, 0.7853982
    %vm220 = vcmp.lt.s32.totalorder %v114, 0
    %v221 = vand.u32 %v114, 2139095040
    %v222 = vshrl.u32 %v221, 23
    %v223 = vsub.s32 %v222, 127
    %v224 = vand.u32 2147483647, %v114
    %v225 = vand.u32 %v224, 8388607
    %v226 = vor.u32 %v225, 8388608
    %v227 = vsub.s32 0, %v226
    %v228 = vadd.s32 %v223, 1
    %vm229 = vcmp.gt.s32.totalorder %v228, 0
    %v230 = vsel %vm229, %v228, 0
    %v231 = vshrl.u32 %v230, 5
    %v232 = vand.u32 %v230, 31
    %v233 = vsub.s32 32, %v232
    %v234 = vshrl.u32 683565275, %v233
    %v235 = vshll.u32 683565275, %v232
    %v236 = vshrl.u32 2475754826, %v233
    %v237 = vor.u32 %v235, %v236
    %v238 = vshll.u32 2475754826, %v232
    %v239 = vshrl.u32 2131351028, %v233
    %v240 = vor.u32 %v238, %v239
    %v241 = vshll.u32 2131351028, %v232
    %v242 = vshrl.u32 2102212464, %v233
    %v243 = vor.u32 %v241, %v242
    %v244 = vshll.u32 2102212464, %v232
    %v245 = vshrl.u32 920167782, %v233
    %v246 = vor.u32 %v244, %v245
    %v247 = vshll.u32 920167782, %v232
    %v248 = vshrl.u32 1326507024, %v233
    %v249 = vor.u32 %v247, %v248
    %vm250 = vcmp.lt.s32.totalorder %v231, 1
    %vm251 = vcmp.lt.s32.totalorder %v231, 2
    %vm252 = vcmp.lt.s32.totalorder %v231, 3
    %vm253 = vcmp.lt.s32.totalorder %v231, 4
    %v254 = vsel %vm250, %v234, %v237
    %v255 = vsel %vm253, %v243, 2102212464
    %v256 = vsel %vm252, %v240, %v255
    %v257 = vsel %vm251, %v254, %v256
    %v258 = vsel %vm250, %v237, %v240
    %v259 = vsel %vm253, %v246, 920167782
    %v260 = vsel %vm252, %v243, %v259
    %v261 = vsel %vm251, %v258, %v260
    %v262 = vsel %vm250, %v240, %v243
    %v263 = vsel %vm253, %v249, 1326507024
    %v264 = vsel %vm252, %v246, %v263
    %v265 = vsel %vm251, %v262, %v264
    %v266 = vshll.u32 %v226, 8
    %v267 = vmul.u32.u64.compose %v266, %v265
    %v268 = vextract.low.u32 %v267
    %v269 = vextract.high.u32 %v267
    %v270 = vmul.u32.u64.compose %v266, %v261
    %v271 = vextract.low.u32 %v270
    %v272 = vextract.high.u32 %v270
    %v273 = vmul.u32 %v266, %v257
    %v274 = vadd.s32 %v269, %v271
    %vm275 = vc.u32 %v269, %v271
    %v276 = vadd.s32 %v272, 1
    %v277 = vsel %vm275, %v276, %v272
    %v278 = vadd.s32 %v273, %v277
    %v279 = vadd.s32 %v278, 536870912
    %v280 = vshrl.u32 %v279, 30
    %v281 = vshll.u32 %v280, 30
    %v282 = vsub.s32 %v278, %v281
    %vm283 = vcmp.lt.s32.totalorder %v282, 0
    %v284 = vsub.s32 0, %v282
    %v285 = vsel %vm283, %v284, %v282
    %v286 = vclz %v285
    %v287 = vsub.s32 %v286, 2
    %vm288 = vcmp.gt.s32.totalorder 0, %v287
    %v289 = vsel %vm288, 0, %v287
    %v290 = vsub.s32 32, %v289
    %v291 = vshll.u32 %v282, %v289
    %v292 = vshrl.u32 %v274, %v290
    %v293 = vor.u32 %v291, %v292
    %v294 = vsub.s32 4294967266, %v289
    %v295 = vadd.s32 %v294, 127
    %v296 = vshll.u32 %v295, 23
    %v297 = vor.u32 4788187, %v296
    %v298 = vand.u32 2147483647, %v297
    %v300 = vcvt.s32.f32 %v293
    %v301 = vmul.f32 %v300, %v298
    %v302 = vxor.u32 %v301, 2147483648
    %v303 = vsel %vm220, %v302, %v301
    %v304 = vsub.s32 4, %v280
    %v305 = vsel %vm220, %v304, %v280
    %v306 = vsel %vm219, %v114, %v303
    %v307 = vsel %vm219, 0, %v305
    %v308 = vcosq.f32.pop %v306
    %v309 = vsinq.f32.pop %v306
    %vm310 = vweird.f32 %v114
    %v311 = vand.u32 %v307, 3
    %vm312 = vcmp.lt.s32.totalorder %v311, 2
    %vm313 = vcmp.eq.s32.totalorder %v311, 0
    %v314 = vxor.u32 %v309, 2147483648
    %v315 = vsel %vm313, %v308, %v314
    %vm316 = vcmp.eq.s32.totalorder %v311, 2
    %v317 = vxor.u32 %v308, 2147483648
    %v318 = vsel %vm316, %v317, %v309
    %v319 = vsel %vm312, %v315, %v318
    %v320 = vsel %vm310, nan, %v319
    %v321 = vmul.f32 %v105, %v217
    %v322 = vmul.f32 %v112, %v320
    %v323 = vand.u32 2147483647, %v113
    %vm324 = vcmp.le.f32.partialorder %v323, 0.7853982
    %vm325 = vcmp.lt.s32.totalorder %v113, 0
    %v326 = vand.u32 %v113, 2139095040
    %v327 = vshrl.u32 %v326, 23
    %v328 = vsub.s32 %v327, 127
    %v329 = vand.u32 2147483647, %v113
    %v330 = vand.u32 %v329, 8388607
    %v331 = vor.u32 %v330, 8388608
    %v332 = vsub.s32 0, %v331
    %v333 = vadd.s32 %v328, 1
    %vm334 = vcmp.gt.s32.totalorder %v333, 0
    %v335 = vsel %vm334, %v333, 0
    %v336 = vshrl.u32 %v335, 5
    %v337 = vand.u32 %v335, 31
    %v338 = vsub.s32 32, %v337
    %v339 = vshrl.u32 683565275, %v338
    %v340 = vshll.u32 683565275, %v337
    %v341 = vshrl.u32 2475754826, %v338
    %v342 = vor.u32 %v340, %v341
    %v343 = vshll.u32 2475754826, %v337
    %v344 = vshrl.u32 2131351028, %v338
    %v345 = vor.u32 %v343, %v344
    %v346 = vshll.u32 2131351028, %v337
    %v347 = vshrl.u32 2102212464, %v338
    %v348 = vor.u32 %v346, %v347
    %v349 = vshll.u32 2102212464, %v337
    %v350 = vshrl.u32 920167782, %v338
    %v351 = vor.u32 %v349, %v350
    %v352 = vshll.u32 920167782, %v337
    %v353 = vshrl.u32 1326507024, %v338
    %v354 = vor.u32 %v352, %v353
    %vm355 = vcmp.lt.s32.totalorder %v336, 1
    %vm356 = vcmp.lt.s32.totalorder %v336, 2
    %vm357 = vcmp.lt.s32.totalorder %v336, 3
    %vm358 = vcmp.lt.s32.totalorder %v336, 4
    %v359 = vsel %vm355, %v339, %v342
    %v360 = vsel %vm358, %v348, 2102212464
    %v361 = vsel %vm357, %v345, %v360
    %v362 = vsel %vm356, %v359, %v361
    %v363 = vsel %vm355, %v342, %v345
    %v364 = vsel %vm358, %v351, 920167782
    %v365 = vsel %vm357, %v348, %v364
    %v366 = vsel %vm356, %v363, %v365
    %v367 = vsel %vm355, %v345, %v348
    %v368 = vsel %vm358, %v354, 1326507024
    %v369 = vsel %vm357, %v351, %v368
    %v370 = vsel %vm356, %v367, %v369
    %v371 = vshll.u32 %v331, 8
    %v372 = vmul.u32.u64.compose %v371, %v370
    %v373 = vextract.low.u32 %v372
    %v374 = vextract.high.u32 %v372
    %v375 = vmul.u32.u64.compose %v371, %v366
    %v376 = vextract.low.u32 %v375
    %v377 = vextract.high.u32 %v375
    %v378 = vmul.u32 %v371, %v362
    %v379 = vadd.s32 %v374, %v376
    %vm380 = vc.u32 %v374, %v376
    %v381 = vadd.s32 %v377, 1
    %v382 = vsel %vm380, %v381, %v377
    %v383 = vadd.s32 %v378, %v382
    %v384 = vadd.s32 %v383, 536870912
    %v385 = vshrl.u32 %v384, 30
    %v386 = vshll.u32 %v385, 30
    %v387 = vsub.s32 %v383, %v386
    %vm388 = vcmp.lt.s32.totalorder %v387, 0
    %v389 = vsub.s32 0, %v387
    %v390 = vsel %vm388, %v389, %v387
    %v391 = vclz %v390
    %v392 = vsub.s32 %v391, 2
    %vm393 = vcmp.gt.s32.totalorder 0, %v392
    %v394 = vsel %vm393, 0, %v392
    %v395 = vsub.s32 32, %v394
    %v396 = vshll.u32 %v387, %v394
    %v397 = vshrl.u32 %v379, %v395
    %v398 = vor.u32 %v396, %v397
    %v399 = vsub.s32 4294967266, %v394
    %v400 = vadd.s32 %v399, 127
    %v401 = vshll.u32 %v400, 23
    %v402 = vor.u32 4788187, %v401
    %v403 = vand.u32 2147483647, %v402
    %v405 = vcvt.s32.f32 %v398
    %v406 = vmul.f32 %v405, %v403
    %v407 = vxor.u32 %v406, 2147483648
    %v408 = vsel %vm325, %v407, %v406
    %v409 = vsub.s32 4, %v385
    %v410 = vsel %vm325, %v409, %v385
    %v411 = vsel %vm324, %v113, %v408
    %v412 = vsel %vm324, 0, %v410
    %v413 = vcosq.f32.pop %v411
    %v414 = vsinq.f32.pop %v411
    %vm415 = vweird.f32 %v113
    %v416 = vadd.s32 %v412, 3
    %v417 = vand.u32 %v416, 3
    %vm418 = vcmp.lt.s32.totalorder %v417, 2
    %vm419 = vcmp.eq.s32.totalorder %v417, 0
    %v420 = vxor.u32 %v414, 2147483648
    %v421 = vsel %vm419, %v413, %v420
    %vm422 = vcmp.eq.s32.totalorder %v417, 2
    %v423 = vxor.u32 %v413, 2147483648
    %v424 = vsel %vm422, %v423, %v414
    %v425 = vsel %vm418, %v421, %v424
    %v426 = vsel %vm415, nan, %v425
    %v427 = vand.u32 2147483647, %v114
    %vm428 = vcmp.le.f32.partialorder %v427, 0.7853982
    %vm429 = vcmp.lt.s32.totalorder %v114, 0
    %v430 = vand.u32 %v114, 2139095040
    %v431 = vshrl.u32 %v430, 23
    %v432 = vsub.s32 %v431, 127
    %v433 = vand.u32 2147483647, %v114
    %v434 = vand.u32 %v433, 8388607
    %v435 = vor.u32 %v434, 8388608
    %v436 = vsub.s32 0, %v435
    %v437 = vadd.s32 %v432, 1
    %vm438 = vcmp.gt.s32.totalorder %v437, 0
    %v439 = vsel %vm438, %v437, 0
    %v440 = vshrl.u32 %v439, 5
    %v441 = vand.u32 %v439, 31
    %v442 = vsub.s32 32, %v441
    %v443 = vshrl.u32 683565275, %v442
    %v444 = vshll.u32 683565275, %v441
    %v445 = vshrl.u32 2475754826, %v442
    %v446 = vor.u32 %v444, %v445
    %v447 = vshll.u32 2475754826, %v441
    %v448 = vshrl.u32 2131351028, %v442
    %v449 = vor.u32 %v447, %v448
    %v450 = vshll.u32 2131351028, %v441
    %v451 = vshrl.u32 2102212464, %v442
    %v452 = vor.u32 %v450, %v451
    %v453 = vshll.u32 2102212464, %v441
    %v454 = vshrl.u32 920167782, %v442
    %v455 = vor.u32 %v453, %v454
    %v456 = vshll.u32 920167782, %v441
    %v457 = vshrl.u32 1326507024, %v442
    %v458 = vor.u32 %v456, %v457
    %vm459 = vcmp.lt.s32.totalorder %v440, 1
    %vm460 = vcmp.lt.s32.totalorder %v440, 2
    %vm461 = vcmp.lt.s32.totalorder %v440, 3
    %vm462 = vcmp.lt.s32.totalorder %v440, 4
    %v463 = vsel %vm459, %v443, %v446
    %v464 = vsel %vm462, %v452, 2102212464
    %v465 = vsel %vm461, %v449, %v464
    %v466 = vsel %vm460, %v463, %v465
    %v467 = vsel %vm459, %v446, %v449
    %v468 = vsel %vm462, %v455, 920167782
    %v469 = vsel %vm461, %v452, %v468
    %v470 = vsel %vm460, %v467, %v469
    %v471 = vsel %vm459, %v449, %v452
    %v472 = vsel %vm462, %v458, 1326507024
    %v473 = vsel %vm461, %v455, %v472
    %v474 = vsel %vm460, %v471, %v473
    %v475 = vshll.u32 %v435, 8
    %v476 = vmul.u32.u64.compose %v475, %v474
    %v477 = vextract.low.u32 %v476
    %v478 = vextract.high.u32 %v476
    %v479 = vmul.u32.u64.compose %v475, %v470
    %v480 = vextract.low.u32 %v479
    %v481 = vextract.high.u32 %v479
    %v482 = vmul.u32 %v475, %v466
    %v483 = vadd.s32 %v478, %v480
    %vm484 = vc.u32 %v478, %v480
    %v485 = vadd.s32 %v481, 1
    %v486 = vsel %vm484, %v485, %v481
    %v487 = vadd.s32 %v482, %v486
    %v488 = vadd.s32 %v487, 536870912
    %v489 = vshrl.u32 %v488, 30
    %v490 = vshll.u32 %v489, 30
    %v491 = vsub.s32 %v487, %v490
    %vm492 = vcmp.lt.s32.totalorder %v491, 0
    %v493 = vsub.s32 0, %v491
    %v494 = vsel %vm492, %v493, %v491
    %v495 = vclz %v494
    %v496 = vsub.s32 %v495, 2
    %vm497 = vcmp.gt.s32.totalorder 0, %v496
    %v498 = vsel %vm497, 0, %v496
    %v499 = vsub.s32 32, %v498
    %v500 = vshll.u32 %v491, %v498
    %v501 = vshrl.u32 %v483, %v499
    %v502 = vor.u32 %v500, %v501
    %v503 = vsub.s32 4294967266, %v498
    %v504 = vadd.s32 %v503, 127
    %v505 = vshll.u32 %v504, 23
    %v506 = vor.u32 4788187, %v505
    %v507 = vand.u32 2147483647, %v506
    %v509 = vcvt.s32.f32 %v502
    %v510 = vmul.f32 %v509, %v507
    %v511 = vxor.u32 %v510, 2147483648
    %v512 = vsel %vm429, %v511, %v510
    %v513 = vsub.s32 4, %v489
    %v514 = vsel %vm429, %v513, %v489
    %v515 = vsel %vm428, %v114, %v512
    %v516 = vsel %vm428, 0, %v514
    %v517 = vcosq.f32.pop %v515
    %v518 = vsinq.f32.pop %v515
    %vm519 = vweird.f32 %v114
    %v520 = vadd.s32 %v516, 3
    %v521 = vand.u32 %v520, 3
    %vm522 = vcmp.lt.s32.totalorder %v521, 2
    %vm523 = vcmp.eq.s32.totalorder %v521, 0
    %v524 = vxor.u32 %v518, 2147483648
    %v525 = vsel %vm523, %v517, %v524
    %vm526 = vcmp.eq.s32.totalorder %v521, 2
    %v527 = vxor.u32 %v517, 2147483648
    %v528 = vsel %vm526, %v527, %v518
    %v529 = vsel %vm522, %v525, %v528
    %v530 = vsel %vm519, nan, %v529
    %v531 = vmul.f32 %v105, %v426
    %v532 = vmul.f32 %v112, %v530
    %v535 = vrot.slane %v531, 4
    %v536 = vrot.slane %v532, 4
    %vm539 = vcmask 1043456
    %v540 = vsel %vm539, %v321, %v535
    %v541 = vsel %vm539, %v322, %v536
    %v542 = vld [vmem:[#allocation4] sm:$0xff]
    %v543 = vld [vmem:[#allocation4 + $0x8] sm:$0xff]
    %v544 = vmul.f32 %v542, 0.1
    %v545 = vmul.f32 %v543, 0.1
    %v546 = vmul.f32 %v544, %v540
    %v547 = vmul.f32 %v545, %v541
    %v548 = vadd.f32 %v542, %v546
    %v549 = vadd.f32 %v543, %v547
    %550 = vst [vmem:[#allocation7] sm:$0xff] %v548
    %551 = vst [vmem:[#allocation7 + $0x8] sm:$0xff] %v549
    // Predicated region
    $region10: #{tpu_custom_call.1} parent=1 // pred_check
      _
    $region11: #{tpu_custom_call.1} parent=1 // pred_check_branch
      %553 = sbr.rel (0) target = $region13
    $region12: #{tpu_custom_call.1} parent=1 // pred_region
      %s555 = ssub.s32 256, 256
      %556 = vsyncadd [#allocation6], %s555
      %s558 = sshll.u32 [#allocation7], 4
      %s559 = int_to_ptr.vmem [resolvable:$true] %s558
      %561 = dma.vmem_to_hbm [thread:$0]  %s559, 256, %s2, [#allocation6]
    $region13: #{tpu_custom_call.1} parent=1 // pred_fallthru
      _
    // Predicated region
    $region14: #{tpu_custom_call.1} parent=1 // pred_check
      _
    $region15: #{tpu_custom_call.1} parent=1 // pred_check_branch
      %563 = sbr.rel (0) target = $region17
    $region16: #{tpu_custom_call.1} parent=1 // pred_region
      %564 = dma.done [#allocation6], 256
    $region17: #{tpu_custom_call.1} parent=1 // pred_fallthru
      _
    %565 = vsyncpa [#allocation5], 1
    %566 = vsyncpa [#allocation6], 1

</llo_original>
